<compile_context>
chip_gen: v7x
topology: tpu7x:2x2x1
jax: 0.10.0
libtpu: 0.0.40
codegen_flags: <defaults>
</compile_context>

<pallas_src>
import functools

import jax
import jax.numpy as jnp
from jax import lax
from jax.experimental import pallas as pl
from jax.experimental.pallas import tpu as pltpu

_LANES = 128
_BLOCK_TARGET_BYTES = 4 << 20  # ~4 MiB block → ~16-20 MiB pipelined working set


# --------------------------------------------------------------------------- #
# Tiling helpers
# --------------------------------------------------------------------------- #
def _divisors(n):
    out = set()
    i = 1
    while i * i <= n:
        if n % i == 0:
            out.add(i)
            out.add(n // i)
        i += 1
    return sorted(out)


def _pick_blocks(c, s, itemsize):
    """Pick (cblk, sblk): (8,128)-legal, lane-dense, ~_BLOCK_TARGET_BYTES."""
    # dtype-aware sublane alignment: f32→8, bf16→16, int8/fp8→32
    c_align = {4: 8, 2: 16, 1: 32}.get(itemsize, 8)

    # Legal spatial blocks: divisors of S that are multiples of 128, else S.
    if s % _LANES == 0:
        s_cands = [d for d in _divisors(s) if d % _LANES == 0]
    else:
        s_cands = [s]  # full extent is always legal
    # Legal channel blocks: aligned divisors of C, else C itself.
    c_cands = [d for d in _divisors(c) if d % c_align == 0] or [c]
    # Prefer >=2 channel blocks so the phase-1 "parallel" C axis can be
    # sharded across both v7x TensorCores.
    c_pref = [d for d in c_cands if d <= c // 2] or c_cands

    s_min, c_min = min(s_cands), min(c_pref)
    sblk = max([d for d in s_cands if c_min * d * itemsize <= _BLOCK_TARGET_BYTES],
               default=s_min)
    cblk = max([d for d in c_pref if d * sblk * itemsize <= _BLOCK_TARGET_BYTES],
               default=c_min)
    return cblk, sblk


def _vmem_limit_bytes(block_bytes):
    """Scoped-VMEM request: ~4 in-flight blocks, clamped by physical VMEM."""
    try:
        capacity = int(pltpu.get_tpu_info().vmem_capacity_bytes)
    except Exception:  # pragma: no cover - conservative fallback (v7x per-TC)
        capacity = 64 << 20
    needed = 4 * block_bytes + (4 << 20)
    return int(min(max(needed, 32 << 20), (capacity * 3) // 4))


# --------------------------------------------------------------------------- #
# Kernels
# --------------------------------------------------------------------------- #
def _stats_init(sum_ref, sumsq_ref):
    @pl.when(jnp.logical_and(pl.program_id(1) == 0, pl.program_id(2) == 0))
    def _():
        sum_ref[...] = jnp.zeros_like(sum_ref)
        sumsq_ref[...] = jnp.zeros_like(sumsq_ref)


def _bn_stats_kernel_lane_dense(x_ref, sum_ref, sumsq_ref):
    """Per-channel partial sum / sum-of-squares into lane-dense (cblk, 128)
    accumulators.  Per-step work is pure VPU adds over 128-lane chunks; the
    final cross-lane reduction happens in the tiny JAX epilogue."""
    _stats_init(sum_ref, sumsq_ref)
    cblk, sblk = x_ref.shape
    n_chunks = sblk // _LANES

    if n_chunks == 1:
        chunk = x_ref[...].astype(jnp.float32)
        s, ss = chunk, chunk * chunk
    else:
        def body(k, carry):
            s, ss = carry
            off = pl.multiple_of(k * _LANES, _LANES)
            chunk = x_ref[:, pl.ds(off, _LANES)].astype(jnp.float32)
            return s + chunk, ss + chunk * chunk

        zero = jnp.zeros((cblk, _LANES), jnp.float32)
        s, ss = lax.fori_loop(0, n_chunks, body, (zero, zero),
                              unroll=min(8, n_chunks))
    sum_ref[...] += s
    sumsq_ref[...] += ss


def _bn_stats_kernel_narrow(x_ref, sum_ref, sumsq_ref):
    """Fallback when the spatial extent is not a multiple of 128 (full-extent
    spatial block): one cross-lane reduce per grid step."""
    _stats_init(sum_ref, sumsq_ref)
    x = x_ref[...].astype(jnp.float32)
    sum_ref[...] += jnp.sum(x, axis=1, keepdims=True)
    sumsq_ref[...] += jnp.sum(x * x, axis=1, keepdims=True)


def _bn_apply_kernel(x_ref, scale_ref, shift_ref, o_ref):
    x = x_ref[...].astype(jnp.float32)                 # (cblk, sblk)
    o_ref[...] = (x * scale_ref[...] + shift_ref[...]).astype(o_ref.dtype)


# --------------------------------------------------------------------------- #
# Wrapper
# --------------------------------------------------------------------------- #
def batchnorm2d_pallas(x_nchw, gamma, beta, eps=1e-5):
    """Training-mode BatchNorm2d forward. x_nchw: (N, C, H, W)."""
    n, c, h, w = x_nchw.shape
    s = h * w
    itemsize = jnp.dtype(x_nchw.dtype).itemsize
    numel = n * c * s
    x_ncs = x_nchw.reshape(n, c, s)                    # free view, no transpose

    cblk, sblk = _pick_blocks(c, s, itemsize)
    grid = (c // cblk, n, s // sblk)
    block_bytes = cblk * sblk * itemsize
    vmem_limit = _vmem_limit_bytes(block_bytes)

    # Leading N dim squeezed out of the kernel refs.
    x_spec = pl.BlockSpec((pl.Squeezed(), cblk, sblk),
                          lambda ci, ni, si: (ni, ci, si))

    lane_dense = (sblk % _LANES == 0)
    stats_kernel = _bn_stats_kernel_lane_dense if lane_dense else _bn_stats_kernel_narrow
    acc_lanes = _LANES if lane_dense else 1
    acc_spec = pl.BlockSpec((cblk, acc_lanes), lambda ci, ni, si: (ci, 0))

    # --- phase 1: per-channel partial sum / sum-of-squares (one read pass) --
    part_sum, part_sumsq = pl.pallas_call(
        stats_kernel,
        out_shape=(jax.ShapeDtypeStruct((c, acc_lanes), jnp.float32),
                   jax.ShapeDtypeStruct((c, acc_lanes), jnp.float32)),
        grid_spec=pltpu.PrefetchScalarGridSpec(
            num_scalar_prefetch=0,
            grid=grid,
            in_specs=[x_spec],
            out_specs=(acc_spec, acc_spec)),
        compiler_params=pltpu.CompilerParams(
            dimension_semantics=("parallel", "arbitrary", "arbitrary"),
            vmem_limit_bytes=vmem_limit),
        cost_estimate=pl.CostEstimate(
            flops=3 * numel, transcendentals=0,
            bytes_accessed=numel * itemsize + 2 * c * acc_lanes * 4),
    )(x_ncs)

    # Tiny (C,)-sized epilogue: final lane reduction + per-channel scale/shift.
    count = jnp.float32(n * s)
    ch_sum = jnp.sum(part_sum, axis=1)
    ch_sumsq = jnp.sum(part_sumsq, axis=1)
    mean = ch_sum / count
    var = jnp.maximum(ch_sumsq / count - mean * mean, 0.0)   # biased variance
    # TODO(synk): sum/sumsq in f32 can lose precision when |mean| >> std;
    # switch to per-block centering / Welford merge if that regime matters.
    inv_std = lax.rsqrt(var + jnp.float32(eps))
    g32 = gamma.astype(jnp.float32)
    scale = (g32 * inv_std).reshape(c, 1)
    shift = (beta.astype(jnp.float32) - mean * g32 * inv_std).reshape(c, 1)

    ch_spec = pl.BlockSpec((cblk, 1), lambda ci, ni, si: (ci, 0))

    # --- phase 2: normalize, y = x*scale + shift (read + write pass) --------
    out_ncs = pl.pallas_call(
        _bn_apply_kernel,
        out_shape=jax.ShapeDtypeStruct((n, c, s), x_nchw.dtype),
        grid_spec=pltpu.PrefetchScalarGridSpec(
            num_scalar_prefetch=0,
            grid=grid,
            in_specs=[x_spec, ch_spec, ch_spec],
            out_specs=x_spec),
        compiler_params=pltpu.CompilerParams(
            dimension_semantics=("parallel", "parallel", "parallel"),
            vmem_limit_bytes=vmem_limit),
        cost_estimate=pl.CostEstimate(
            flops=2 * numel, transcendentals=0,
            bytes_accessed=2 * numel * itemsize),
    )(x_ncs, scale, shift)

    return out_ncs.reshape(n, c, h, w)


class DispatchNorm:
    """JAX/Pallas analogue of the PyTorch DispatchNorm dispatcher."""

    def __init__(self, norm, **kwargs):
        self.norm = norm
        self.kwargs = kwargs
        self.norm_layer = self._init_norm()

    def _init_norm(self):
        if self.norm == "BatchNorm2d":
            c = self.kwargs["num_features"]
            # PyTorch-default affine parameters: weight=1, bias=0.
            self.gamma = jnp.ones((c,), dtype=jnp.float32)
            self.beta = jnp.zeros((c,), dtype=jnp.float32)
            self.eps = float(self.kwargs.get("eps", 1e-5))
            return jax.jit(functools.partial(
                batchnorm2d_pallas, gamma=self.gamma, beta=self.beta, eps=self.eps))
        else:
            # User-designed norms dispatched via polymorphism (callable factory).
            # TODO(synk): only the official BatchNorm2d branch is lowered to Pallas.
            return self.norm(**self.kwargs)

    def __call__(self, x):
        return self.norm_layer(x)


def _reference_batchnorm2d(x, gamma, beta, eps=1e-5):
    mean = jnp.mean(x, axis=(0, 2, 3), keepdims=True)
    var = jnp.mean((x - mean) ** 2, axis=(0, 2, 3), keepdims=True)
    return (x - mean) * jax.lax.rsqrt(var + eps) * gamma.reshape(1, -1, 1, 1) \
        + beta.reshape(1, -1, 1, 1)


if __name__ == "__main__":
    key = jax.random.PRNGKey(0)
    N, C, H, W = 2, 4, 16, 16
    x = jax.random.normal(key, (N, C, H, W), dtype=jnp.float32)

    dn = DispatchNorm("BatchNorm2d", num_features=C)
    out = dn(x)
    out = jax.block_until_ready(out)

    ref = _reference_batchnorm2d(x, dn.gamma, dn.beta, dn.eps)
    assert out.shape == (N, C, H, W)
    assert jnp.allclose(out, ref, atol=1e-4, rtol=1e-4), \
        f"max err {jnp.max(jnp.abs(out - ref))}"
    print("KERNEL_OK")
</pallas_src>

<mosaic_0001>
module attributes {stable_mosaic.version = 11 : i64} {
  func.func @_bn_stats_kernel_lane_dense(%arg0: i32, %arg1: i32, %arg2: i32, %arg3: memref<1x4x256xf32, #tpu.memory_space<vmem>>, %arg4: memref<4x128xf32, #tpu.memory_space<vmem>>, %arg5: memref<4x128xf32, #tpu.memory_space<vmem>>) attributes {dimension_semantics = [#tpu.dimension_semantics<parallel>, #tpu.dimension_semantics<arbitrary>, #tpu.dimension_semantics<arbitrary>], iteration_bounds = array<i64: 1, 2, 1>, scalar_prefetch = 0 : i64, scratch_operands = 0 : i64, tpu.core_type = #tpu.core_type<tc>, window_params = [{transform_indices = @transform_0, window_bounds = array<i64: 1, 4, 256>}, {transform_indices = @transform_1, window_bounds = array<i64: 4, 128>}, {transform_indices = @transform_2, window_bounds = array<i64: 4, 128>}]} {
    %c0_i32 = arith.constant 0 : i32
    %0 = arith.cmpi eq, %arg1, %c0_i32 : i32
    %c0_i32_0 = arith.constant 0 : i32
    %1 = arith.cmpi eq, %arg2, %c0_i32_0 : i32
    %2 = arith.andi %0, %1 : i1
    %3 = arith.extui %2 : i1 to i32
    %c0_i32_1 = arith.constant 0 : i32
    %4 = arith.cmpi ne, %3, %c0_i32_1 : i32
    scf.if %4 {
      %cst_15 = arith.constant 0.000000e+00 : f32
      %28 = vector.broadcast %cst_15 : f32 to vector<4x128xf32>
      %c0_16 = arith.constant 0 : index
      %c0_17 = arith.constant 0 : index
      %29 = vector.load %arg4[%c0_16, %c0_17] : memref<4x128xf32, #tpu.memory_space<vmem>>, vector<4x128xf32>
      tpu.vector_store %arg4[%c0_16, %c0_17], %28 {strides = array<i32>} : memref<4x128xf32, #tpu.memory_space<vmem>>, vector<4x128xf32>,
      %cst_18 = arith.constant 0.000000e+00 : f32
      %30 = vector.broadcast %cst_18 : f32 to vector<4x128xf32>
      %c0_19 = arith.constant 0 : index
      %c0_20 = arith.constant 0 : index
      %31 = vector.load %arg5[%c0_19, %c0_20] : memref<4x128xf32, #tpu.memory_space<vmem>>, vector<4x128xf32>
      tpu.vector_store %arg5[%c0_19, %c0_20], %30 {strides = array<i32>} : memref<4x128xf32, #tpu.memory_space<vmem>>, vector<4x128xf32>,
    } else {
    }
    %cst = arith.constant 0.000000e+00 : f32
    %5 = vector.broadcast %cst : f32 to vector<4x128xf32>
    %c0_i32_2 = arith.constant 0 : i32
    %c128_i32 = arith.constant 128 : i32
    %6 = arith.muli %c0_i32_2, %c128_i32 : i32
    %7 = tpu.assume_multiple %6, 128 : i32
    %c0 = arith.constant 0 : index
    %c0_3 = arith.constant 0 : index
    %8 = arith.index_cast %7 : i32 to index
    %9 = vector.load %arg3[%c0, %c0_3, %8] : memref<1x4x256xf32, #tpu.memory_space<vmem>>, vector<1x4x128xf32>
    %10 = vector.shape_cast %9 : vector<1x4x128xf32> to vector<4x128xf32>
    %11 = arith.addf %5, %10 : vector<4x128xf32>
    %12 = arith.mulf %10, %10 : vector<4x128xf32>
    %13 = arith.addf %5, %12 : vector<4x128xf32>
    %c1_i32 = arith.constant 1 : i32
    %c128_i32_4 = arith.constant 128 : i32
    %14 = arith.muli %c1_i32, %c128_i32_4 : i32
    %15 = tpu.assume_multiple %14, 128 : i32
    %c0_5 = arith.constant 0 : index
    %c0_6 = arith.constant 0 : index
    %16 = arith.index_cast %15 : i32 to index
    %17 = vector.load %arg3[%c0_5, %c0_6, %16] : memref<1x4x256xf32, #tpu.memory_space<vmem>>, vector<1x4x128xf32>
    %18 = vector.shape_cast %17 : vector<1x4x128xf32> to vector<4x128xf32>
    %19 = arith.addf %11, %18 : vector<4x128xf32>
    %20 = arith.mulf %18, %18 : vector<4x128xf32>
    %21 = arith.addf %13, %20 : vector<4x128xf32>
    %c2_i32 = arith.constant 2 : i32
    %c0_7 = arith.constant 0 : index
    %c0_8 = arith.constant 0 : index
    %22 = vector.load %arg4[%c0_7, %c0_8] : memref<4x128xf32, #tpu.memory_space<vmem>>, vector<4x128xf32>
    %23 = arith.addf %22, %19 : vector<4x128xf32>
    %c0_9 = arith.constant 0 : index
    %c0_10 = arith.constant 0 : index
    %24 = vector.load %arg4[%c0_9, %c0_10] : memref<4x128xf32, #tpu.memory_space<vmem>>, vector<4x128xf32>
    tpu.vector_store %arg4[%c0_9, %c0_10], %23 {strides = array<i32>} : memref<4x128xf32, #tpu.memory_space<vmem>>, vector<4x128xf32>,
    %c0_11 = arith.constant 0 : index
    %c0_12 = arith.constant 0 : index
    %25 = vector.load %arg5[%c0_11, %c0_12] : memref<4x128xf32, #tpu.memory_space<vmem>>, vector<4x128xf32>
    %26 = arith.addf %25, %21 : vector<4x128xf32>
    %c0_13 = arith.constant 0 : index
    %c0_14 = arith.constant 0 : index
    %27 = vector.load %arg5[%c0_13, %c0_14] : memref<4x128xf32, #tpu.memory_space<vmem>>, vector<4x128xf32>
    tpu.vector_store %arg5[%c0_13, %c0_14], %26 {strides = array<i32>} : memref<4x128xf32, #tpu.memory_space<vmem>>, vector<4x128xf32>,
    return
  }
  func.func @transform_0(%arg0: i32, %arg1: i32, %arg2: i32) -> (i32, i32, i32) {
    %c0_i32 = arith.constant 0 : i32
    return %arg1, %arg0, %arg2 : i32, i32, i32
  }
  func.func @transform_1(%arg0: i32, %arg1: i32, %arg2: i32) -> (i32, i32) {
    %c0_i32 = arith.constant 0 : i32
    %c0_i32_0 = arith.constant 0 : i32
    return %arg0, %c0_i32 : i32, i32
  }
  func.func @transform_2(%arg0: i32, %arg1: i32, %arg2: i32) -> (i32, i32) {
    %c0_i32 = arith.constant 0 : i32
    %c0_i32_0 = arith.constant 0 : i32
    return %arg0, %c0_i32 : i32, i32
  }
}

module attributes {stable_mosaic.version = 11 : i64} {
  func.func @_bn_apply_kernel(%arg0: i32, %arg1: i32, %arg2: i32, %arg3: memref<1x4x256xf32, #tpu.memory_space<vmem>>, %arg4: memref<4x1xf32, #tpu.memory_space<vmem>>, %arg5: memref<4x1xf32, #tpu.memory_space<vmem>>, %arg6: memref<1x4x256xf32, #tpu.memory_space<vmem>>) attributes {dimension_semantics = [#tpu.dimension_semantics<parallel>, #tpu.dimension_semantics<parallel>, #tpu.dimension_semantics<parallel>], iteration_bounds = array<i64: 1, 2, 1>, scalar_prefetch = 0 : i64, scratch_operands = 0 : i64, tpu.core_type = #tpu.core_type<tc>, window_params = [{transform_indices = @transform_0, window_bounds = array<i64: 1, 4, 256>}, {transform_indices = @transform_1, window_bounds = array<i64: 4, 1>}, {transform_indices = @transform_2, window_bounds = array<i64: 4, 1>}, {transform_indices = @transform_3, window_bounds = array<i64: 1, 4, 256>}]} {
    %c0 = arith.constant 0 : index
    %c0_0 = arith.constant 0 : index
    %c0_1 = arith.constant 0 : index
    %0 = vector.load %arg3[%c0, %c0_0, %c0_1] : memref<1x4x256xf32, #tpu.memory_space<vmem>>, vector<1x4x256xf32>
    %1 = vector.shape_cast %0 : vector<1x4x256xf32> to vector<4x256xf32>
    %c0_2 = arith.constant 0 : index
    %c0_3 = arith.constant 0 : index
    %2 = vector.load %arg4[%c0_2, %c0_3] : memref<4x1xf32, #tpu.memory_space<vmem>>, vector<4x1xf32>
    %3 = vector.broadcast %2 : vector<4x1xf32> to vector<4x256xf32>
    %4 = arith.mulf %1, %3 : vector<4x256xf32>
    %c0_4 = arith.constant 0 : index
    %c0_5 = arith.constant 0 : index
    %5 = vector.load %arg5[%c0_4, %c0_5] : memref<4x1xf32, #tpu.memory_space<vmem>>, vector<4x1xf32>
    %6 = vector.broadcast %5 : vector<4x1xf32> to vector<4x256xf32>
    %7 = arith.addf %4, %6 : vector<4x256xf32>
    %c0_6 = arith.constant 0 : index
    %c0_7 = arith.constant 0 : index
    %c0_8 = arith.constant 0 : index
    %8 = vector.load %arg6[%c0_6, %c0_7, %c0_8] : memref<1x4x256xf32, #tpu.memory_space<vmem>>, vector<1x4x256xf32>
    %9 = vector.shape_cast %8 : vector<1x4x256xf32> to vector<4x256xf32>
    %10 = vector.shape_cast %7 : vector<4x256xf32> to vector<1x4x256xf32>
    tpu.vector_store %arg6[%c0_6, %c0_7, %c0_8], %10 {strides = array<i32>} : memref<1x4x256xf32, #tpu.memory_space<vmem>>, vector<1x4x256xf32>,
    return
  }
  func.func @transform_0(%arg0: i32, %arg1: i32, %arg2: i32) -> (i32, i32, i32) {
    %c0_i32 = arith.constant 0 : i32
    return %arg1, %arg0, %arg2 : i32, i32, i32
  }
  func.func @transform_1(%arg0: i32, %arg1: i32, %arg2: i32) -> (i32, i32) {
    %c0_i32 = arith.constant 0 : i32
    %c0_i32_0 = arith.constant 0 : i32
    return %arg0, %c0_i32 : i32, i32
  }
  func.func @transform_2(%arg0: i32, %arg1: i32, %arg2: i32) -> (i32, i32) {
    %c0_i32 = arith.constant 0 : i32
    %c0_i32_0 = arith.constant 0 : i32
    return %arg0, %c0_i32 : i32, i32
  }
  func.func @transform_3(%arg0: i32, %arg1: i32, %arg2: i32) -> (i32, i32, i32) {
    %c0_i32 = arith.constant 0 : i32
    return %arg1, %arg0, %arg2 : i32, i32, i32
  }
}

</mosaic_0001>

<llo_original>
// kernel: batchnorm2d_pallas.2
$region0: #{batchnorm2d_pallas.2}
  #allocation0 [shape = 'u32[]', space=smem, size = 0x4, offset = 0x4, fixed_abs, tag = 'smem constant byte address 0x4 - core index']
  #allocation1 [shape = 'u32[144,128]{1,0:T(1,128)}', space=vmem, size = 0x12000, scoped, tag = 'internal scratch']
  %s0 = inlined_call_operand.vmem [shape: f32[2,4,256], index: 0, kind: input, shape index: {}]
  %s1 = inlined_call_operand.vmem [shape: f32[4,128], index: 1, kind: output, shape index: {0}]
  %s2 = inlined_call_operand.vmem [shape: f32[4,128], index: 2, kind: output, shape index: {1}]
  %3 = xla_tuple %s1, %s2
  %s4 = sld [smem:[#allocation0]]
  $region49: #{batchnorm2d_pallas.2} parent=0
    _
  %s6 = ssub.s32 1, %s4
  %s7 = scalar_select 0, %s6, %s4
  loop: start=0, step=1, limit=4
  $region2: #{batchnorm2d_pallas.2} parent=0 // loop_pre_header
    _
  $region3: #{batchnorm2d_pallas.2} parent=0 // loop_header
    %s9 = sphi 0, %s13
    %p10 = scmp.ge.s32.totalorder %s9, 4
    %s16 = sphi 0, %s35
    %s17 = sphi 0, %s31
    %s18 = sphi 0, %s27
    %s19 = sphi 0, %s16
    %s20 = sphi 0, %s17
    %s21 = sphi 0, %s18
    %s22 = sphi 0, %s19
    %s23 = sphi 0, %s20
    %s24 = sphi 0, %s21
    %s42 = sphi 0, %s44
    %s45 = sphi 0, %s42
    %s46 = sphi 0, %s45
    %s62 = sphi 0, %s46
    %s68 = sphi 0, %s70
    %s71 = sphi 0, %s68
    %s72 = sphi 0, %s71
    %s88 = sphi 0, %s72
    %s94 = sphi 0, %s96
    %s97 = sphi 0, %s94
    %s98 = sphi 0, %s97
    %s114 = sphi 0, %s98
  $region4: #{batchnorm2d_pallas.2} parent=0 // loop_header_branch
    %12 = sbr.rel (%p10) target = $region8
  $region5: #{batchnorm2d_pallas.2} parent=0 // loop_body
    %s14 = ssub.s32 %s9, 1
    %s15 = ssub.s32 %s9, 2
    %s25 = sadd.s32 1, %s18
    %p26 = scmp.ge.s32.totalorder %s25, 1
    %s27 = scalar_select %p26, 0, %s25
    %s28 = sadd.s32 1, %s17
    %s29 = scalar_select %p26, %s28, %s17
    %p30 = scmp.ge.s32.totalorder %s29, 2
    %s31 = scalar_select %p30, 0, %s29
    %s32 = sadd.s32 1, %s16
    %s33 = scalar_select %p30, %s32, %s16
    %p34 = scmp.ge.s32.totalorder %s33, 1
    %s35 = scalar_select %p34, 0, %s33
    %s36 = ssub.s32 %s17, %s31
    %s37 = ssub.s32 %s16, %s35
    %s38 = sor.u32 %s36, %s37
    %s39 = ssub.s32 %s18, %s27
    %s40 = sor.u32 %s38, %s39
    %p41 = scmp.eq.s32.totalorder %s40, 0
    %s43 = sadd.s32 %s42, 1
    %s44 = scalar_select %p41, %s42, %s43
    %p47 = pneg %p41
    %p48 = scmp.eq.s32.totalorder %s9, 1
    %p49 = por %p47, %p48
    %p50 = scmp.ne.s32.totalorder %s42, %s45
    %p51 = scmp.eq.s32.totalorder %s9, 0
    %p52 = por %p50, %p51
    %p53 = scmp.ne.s32.totalorder %s42, %s45
    %p54 = scmp.eq.s32.totalorder %s14, 1
    %p55 = por %p53, %p54
    %p56 = scmp.ne.s32.totalorder %s45, %s46
    %p57 = scmp.eq.s32.totalorder %s14, 0
    %p58 = por %p56, %p57
    %p59 = scmp.ne.s32.totalorder %s45, %s46
    %p60 = scmp.eq.s32.totalorder %s15, 1
    %p61 = por %p59, %p60
    %p63 = scmp.ne.s32.totalorder %s46, %s62
    %p64 = scmp.eq.s32.totalorder %s15, 0
    %p65 = por %p63, %p64
    %s66 = ssub.s32 %s16, %s35
    %p67 = scmp.eq.s32.totalorder %s66, 0
    %s69 = sadd.s32 %s68, 1
    %s70 = scalar_select %p67, %s68, %s69
    %p73 = pneg %p67
    %p74 = scmp.eq.s32.totalorder %s9, 1
    %p75 = por %p73, %p74
    %p76 = scmp.ne.s32.totalorder %s68, %s71
    %p77 = scmp.eq.s32.totalorder %s9, 0
    %p78 = por %p76, %p77
    %p79 = scmp.ne.s32.totalorder %s68, %s71
    %p80 = scmp.eq.s32.totalorder %s14, 1
    %p81 = por %p79, %p80
    %p82 = scmp.ne.s32.totalorder %s71, %s72
    %p83 = scmp.eq.s32.totalorder %s14, 0
    %p84 = por %p82, %p83
    %p85 = scmp.ne.s32.totalorder %s71, %s72
    %p86 = scmp.eq.s32.totalorder %s15, 1
    %p87 = por %p85, %p86
    %p89 = scmp.ne.s32.totalorder %s72, %s88
    %p90 = scmp.eq.s32.totalorder %s15, 0
    %p91 = por %p89, %p90
    %s92 = ssub.s32 %s16, %s35
    %p93 = scmp.eq.s32.totalorder %s92, 0
    %s95 = sadd.s32 %s94, 1
    %s96 = scalar_select %p93, %s94, %s95
    %p99 = pneg %p93
    %p100 = scmp.eq.s32.totalorder %s9, 1
    %p101 = por %p99, %p100
    %p102 = scmp.ne.s32.totalorder %s94, %s97
    %p103 = scmp.eq.s32.totalorder %s9, 0
    %p104 = por %p102, %p103
    %p105 = scmp.ne.s32.totalorder %s94, %s97
    %p106 = scmp.eq.s32.totalorder %s14, 1
    %p107 = por %p105, %p106
    %p108 = scmp.ne.s32.totalorder %s97, %s98
    %p109 = scmp.eq.s32.totalorder %s14, 0
    %p110 = por %p108, %p109
    %p111 = scmp.ne.s32.totalorder %s97, %s98
    %p112 = scmp.eq.s32.totalorder %s15, 1
    %p113 = por %p111, %p112
    %p115 = scmp.ne.s32.totalorder %s98, %s114
    %p116 = scmp.eq.s32.totalorder %s15, 0
    %p117 = por %p115, %p116
    %p118 = scmp.le.s32.totalorder 1, %s9
    %p119 = scmp.lt.s32.totalorder %s9, 3
    %p120 = pnand %p118, %p119
    %p121 = pneg %p120
    // Predicated region
    $region9: #{batchnorm2d_pallas.2} parent=5 // pred_check
      _
    $region10: #{batchnorm2d_pallas.2} parent=5 // pred_check_branch
      %123 = sbr.rel (%p120) target = $region12
    $region11: #{batchnorm2d_pallas.2} parent=5 // pred_region
      %s124 = ssub.s32 %s9, 1
    $region12: #{batchnorm2d_pallas.2} parent=5 // pred_fallthru
      _
    %p125 = scmp.lt.s32.totalorder %s9, 2
    // Predicated region
    $region13: #{batchnorm2d_pallas.2} parent=5 // pred_check
      %p126 = pneg %p125
    $region14: #{batchnorm2d_pallas.2} parent=5 // pred_check_branch
      %128 = sbr.rel (%p126) target = $region16
    $region15: #{batchnorm2d_pallas.2} parent=5 // pred_region
      // Predicated region
      $region17: #{batchnorm2d_pallas.2} parent=15 // pred_check
        %p129 = pneg %p52
      $region18: #{batchnorm2d_pallas.2} parent=15 // pred_check_branch
        %131 = sbr.rel (%p129) target = $region20
      $region19: #{batchnorm2d_pallas.2} parent=15 // pred_region
        %s132 = smul.u32 2, %s18
        %p133 = scmp.lt.s32.totalorder %s17, 1
        %s134 = scalar_select %p133, %s17, 1
        %p135 = scmp.lt.s32.totalorder %s16, 0
        %s136 = scalar_select %p135, %s16, 0
        %p137 = scmp.lt.s32.totalorder %s132, 1
        %s138 = scalar_select %p137, %s132, 1
        %s139 = smul.addr %s136, 2
        %s140 = sadd.s32 %s138, %s139
        %s141 = smul.addr %s134, 2
        %s142 = sadd.s32 %s140, %s141
        %s143 = smul.addr %s142, 4
        %s144 = scalar_lea.vmem %s0, %s143
        %s145 = smul.u32 2, %s18
      $region20: #{batchnorm2d_pallas.2} parent=15 // pred_fallthru
        _
    $region16: #{batchnorm2d_pallas.2} parent=5 // pred_fallthru
      _
    %p146 = scmp.le.s32.totalorder 1, %s9
    %p147 = scmp.lt.s32.totalorder %s9, 3
    %p148 = pnand %p146, %p147
    %p149 = pneg %p148
    // Predicated region
    $region21: #{batchnorm2d_pallas.2} parent=5 // pred_check
      _
    $region22: #{batchnorm2d_pallas.2} parent=5 // pred_check_branch
      %151 = sbr.rel (%p148) target = $region24
    $region23: #{batchnorm2d_pallas.2} parent=5 // pred_region
      %s152 = ssub.s32 %s9, 1
      %s153 = smul.u32 2, %s21
      %p154 = scmp.lt.s32.totalorder %s20, 1
      %s155 = scalar_select %p154, %s20, 1
      %p156 = scmp.lt.s32.totalorder %s19, 0
      %s157 = scalar_select %p156, %s19, 0
      %p158 = scmp.lt.s32.totalorder %s153, 1
      %s159 = scalar_select %p158, %s153, 1
      %s160 = smul.addr %s157, 2
      %s161 = sadd.s32 %s159, %s160
      %s162 = smul.addr %s155, 2
      %s163 = sadd.s32 %s161, %s162
      %s164 = smul.addr %s163, 4
      %s165 = scalar_lea.vmem %s0, %s164
      %p166 = pneg %p58
      %p167 = pneg %p55
      %p168 = pneg %p84
      %p169 = pneg %p81
      %p170 = scmp.lt.s32.totalorder %s19, 0
      %s171 = scalar_select %p170, %s19, 0
      %s172 = smul.addr %s171, 4
      %s173 = scalar_lea.vmem %s1, %s172
      %p174 = pneg %p110
      %p175 = pneg %p107
      %p176 = scmp.lt.s32.totalorder %s19, 0
      %s177 = scalar_select %p176, %s19, 0
      %s178 = smul.addr %s177, 4
      %s179 = scalar_lea.vmem %s2, %s178
      %s180 = smul.u32 2, %s21
      %p181 = scmp.lt.s32.totalorder %s20, 1
      %s182 = scalar_select %p181, %s20, 1
      %p183 = scmp.lt.s32.totalorder %s19, 0
      %s184 = scalar_select %p183, %s19, 0
      %p185 = scmp.lt.s32.totalorder %s180, 1
      %s186 = scalar_select %p185, %s180, 1
      %s187 = smul.addr %s184, 2
      %s188 = sadd.s32 %s186, %s187
      %s189 = smul.addr %s182, 2
      %s190 = sadd.s32 %s188, %s189
      %s191 = smul.addr %s190, 4
      %s192 = scalar_lea.vmem %s0, %s191
      %s193 = smul.u32 2, %s21
      %p194 = scmp.lt.s32.totalorder %s19, 0
      %s195 = scalar_select %p194, %s19, 0
      %s196 = smul.addr %s195, 4
      %s197 = scalar_lea.vmem %s1, %s196
      %p198 = scmp.lt.s32.totalorder %s19, 0
      %s199 = scalar_select %p198, %s19, 0
      %s200 = smul.addr %s199, 4
      %s201 = scalar_lea.vmem %s2, %s200
      %p202 = scmp.eq.s32.totalorder %s20, 0
      %p203 = scmp.eq.s32.totalorder %s21, 0
      %p204 = pnand %p202, %p203
      %p205 = pneg %p204
      // Predicated region
      $region25: #{batchnorm2d_pallas.2} parent=23 // pred_check
        _
      $region26: #{batchnorm2d_pallas.2} parent=23 // pred_check_branch
        %207 = sbr.rel (%p204) target = $region28
      $region27: #{batchnorm2d_pallas.2} parent=23 // pred_region
        %208 = vst [vmem:[%s197] sm:$0xf] 0.0
        %209 = vst [vmem:[%s201] sm:$0xf] 0.0
      $region28: #{batchnorm2d_pallas.2} parent=23 // pred_fallthru
        _
      %v210 = vld [vmem:[%s192] sm:$0xf]
      %v211 = vadd.f32 %v210, 0.0
      %v212 = vmul.f32 %v210, %v210
      %v213 = vadd.f32 %v212, 0.0
      %s214 = scalar_lea.vmem %s192, 4
      %v215 = vld [vmem:[%s214] sm:$0xf]
      %v216 = vadd.f32 %v211, %v215
      %v217 = vmul.f32 %v215, %v215
      %v218 = vadd.f32 %v213, %v217
      %v219 = vld [vmem:[%s197] sm:$0xf]
      %v220 = vadd.f32 %v219, %v216
      %221 = vst [vmem:[%s197] sm:$0xf] %v220
      %v222 = vld [vmem:[%s201] sm:$0xf]
      %v223 = vadd.f32 %v222, %v218
      %224 = vst [vmem:[%s201] sm:$0xf] %v223
      %p225 = scmp.lt.s32.totalorder %s19, 0
      %s226 = scalar_select %p225, %s19, 0
      %s227 = smul.addr %s226, 4
      %s228 = scalar_lea.vmem %s1, %s227
      %p229 = scmp.lt.s32.totalorder %s19, 0
      %s230 = scalar_select %p229, %s19, 0
      %s231 = smul.addr %s230, 4
      %s232 = scalar_lea.vmem %s2, %s231
      // Predicated region
      $region29: #{batchnorm2d_pallas.2} parent=23 // pred_check
        %p233 = pneg %p81
      $region30: #{batchnorm2d_pallas.2} parent=23 // pred_check_branch
        %235 = sbr.rel (%p233) target = $region32
      $region31: #{batchnorm2d_pallas.2} parent=23 // pred_region
        _
      $region32: #{batchnorm2d_pallas.2} parent=23 // pred_fallthru
        _
      // Predicated region
      $region33: #{batchnorm2d_pallas.2} parent=23 // pred_check
        %p236 = pneg %p107
      $region34: #{batchnorm2d_pallas.2} parent=23 // pred_check_branch
        %238 = sbr.rel (%p236) target = $region36
      $region35: #{batchnorm2d_pallas.2} parent=23 // pred_region
        _
      $region36: #{batchnorm2d_pallas.2} parent=23 // pred_fallthru
        _
      // Predicated region
      $region37: #{batchnorm2d_pallas.2} parent=23 // pred_check
        %p239 = pneg %p81
      $region38: #{batchnorm2d_pallas.2} parent=23 // pred_check_branch
        %241 = sbr.rel (%p239) target = $region40
      $region39: #{batchnorm2d_pallas.2} parent=23 // pred_region
        %p242 = scmp.lt.s32.totalorder %s19, 0
        %s243 = scalar_select %p242, %s19, 0
        %s244 = smul.addr %s243, 4
        %s245 = scalar_lea.vmem %s1, %s244
      $region40: #{batchnorm2d_pallas.2} parent=23 // pred_fallthru
        _
      // Predicated region
      $region41: #{batchnorm2d_pallas.2} parent=23 // pred_check
        %p246 = pneg %p107
      $region42: #{batchnorm2d_pallas.2} parent=23 // pred_check_branch
        %248 = sbr.rel (%p246) target = $region44
      $region43: #{batchnorm2d_pallas.2} parent=23 // pred_region
        %p249 = scmp.lt.s32.totalorder %s19, 0
        %s250 = scalar_select %p249, %s19, 0
        %s251 = smul.addr %s250, 4
        %s252 = scalar_lea.vmem %s2, %s251
      $region44: #{batchnorm2d_pallas.2} parent=23 // pred_fallthru
        _
    $region24: #{batchnorm2d_pallas.2} parent=5 // pred_fallthru
      _
    %p253 = scmp.le.s32.totalorder 2, %s9
    // Predicated region
    $region45: #{batchnorm2d_pallas.2} parent=5 // pred_check
      %p254 = pneg %p253
    $region46: #{batchnorm2d_pallas.2} parent=5 // pred_check_branch
      %256 = sbr.rel (%p254) target = $region48
    $region47: #{batchnorm2d_pallas.2} parent=5 // pred_region
      %s257 = ssub.s32 %s9, 2
    $region48: #{batchnorm2d_pallas.2} parent=5 // pred_fallthru
      _
  $region6: #{batchnorm2d_pallas.2} parent=0 // loop_footer
    %s13 = sadd.s32 1, %s9
  $region7: #{batchnorm2d_pallas.2} parent=0 // loop_footer_branch
    %8 = sbr.rel target = $region3
  $region8: #{batchnorm2d_pallas.2} parent=0 // loop_exit
    _

// kernel: batchnorm2d_pallas.3
$region0: #{batchnorm2d_pallas.3}
  #allocation0 [shape = 'u32[]', space=smem, size = 0x4, offset = 0x4, fixed_abs, tag = 'smem constant byte address 0x4 - core index']
  #allocation1 [shape = 'u32[144,128]{1,0:T(1,128)}', space=vmem, size = 0x12000, scoped, tag = 'internal scratch']
  %s0 = inlined_call_operand.vmem [shape: f32[2,4,256], index: 0, kind: input, shape index: {}]
  %s1 = inlined_call_operand.vmem [shape: f32[4,1], index: 1, kind: input, shape index: {}]
  %s2 = inlined_call_operand.vmem [shape: f32[4,1], index: 2, kind: input, shape index: {}]
  %s3 = inlined_call_operand.vmem [shape: f32[2,4,256], index: 3, kind: output, shape index: {}]
  %s4 = sld [smem:[#allocation0]]
  $region45: #{batchnorm2d_pallas.3} parent=0
    _
  %s6 = ssub.s32 1, %s4
  %s7 = scalar_select 0, %s6, %s4
  loop: start=0, step=1, limit=4
  $region2: #{batchnorm2d_pallas.3} parent=0 // loop_pre_header
    _
  $region3: #{batchnorm2d_pallas.3} parent=0 // loop_header
    %s9 = sphi 0, %s13
    %p10 = scmp.ge.s32.totalorder %s9, 4
    %s16 = sphi 0, %s35
    %s17 = sphi 0, %s31
    %s18 = sphi 0, %s27
    %s19 = sphi 0, %s16
    %s20 = sphi 0, %s17
    %s21 = sphi 0, %s18
    %s22 = sphi 0, %s19
    %s23 = sphi 0, %s20
    %s24 = sphi 0, %s21
    %s42 = sphi 0, %s44
    %s45 = sphi 0, %s42
    %s46 = sphi 0, %s45
    %s62 = sphi 0, %s46
    %s68 = sphi 0, %s70
    %s71 = sphi 0, %s68
    %s72 = sphi 0, %s71
    %s88 = sphi 0, %s72
    %s94 = sphi 0, %s96
    %s97 = sphi 0, %s94
    %s98 = sphi 0, %s97
    %s114 = sphi 0, %s98
    %s124 = sphi 0, %s126
    %s127 = sphi 0, %s124
    %s128 = sphi 0, %s127
    %s144 = sphi 0, %s128
  $region4: #{batchnorm2d_pallas.3} parent=0 // loop_header_branch
    %12 = sbr.rel (%p10) target = $region8
  $region5: #{batchnorm2d_pallas.3} parent=0 // loop_body
    %s14 = ssub.s32 %s9, 1
    %s15 = ssub.s32 %s9, 2
    %s25 = sadd.s32 1, %s18
    %p26 = scmp.ge.s32.totalorder %s25, 1
    %s27 = scalar_select %p26, 0, %s25
    %s28 = sadd.s32 1, %s17
    %s29 = scalar_select %p26, %s28, %s17
    %p30 = scmp.ge.s32.totalorder %s29, 2
    %s31 = scalar_select %p30, 0, %s29
    %s32 = sadd.s32 1, %s16
    %s33 = scalar_select %p30, %s32, %s16
    %p34 = scmp.ge.s32.totalorder %s33, 1
    %s35 = scalar_select %p34, 0, %s33
    %s36 = ssub.s32 %s17, %s31
    %s37 = ssub.s32 %s16, %s35
    %s38 = sor.u32 %s36, %s37
    %s39 = ssub.s32 %s18, %s27
    %s40 = sor.u32 %s38, %s39
    %p41 = scmp.eq.s32.totalorder %s40, 0
    %s43 = sadd.s32 %s42, 1
    %s44 = scalar_select %p41, %s42, %s43
    %p47 = pneg %p41
    %p48 = scmp.eq.s32.totalorder %s9, 1
    %p49 = por %p47, %p48
    %p50 = scmp.ne.s32.totalorder %s42, %s45
    %p51 = scmp.eq.s32.totalorder %s9, 0
    %p52 = por %p50, %p51
    %p53 = scmp.ne.s32.totalorder %s42, %s45
    %p54 = scmp.eq.s32.totalorder %s14, 1
    %p55 = por %p53, %p54
    %p56 = scmp.ne.s32.totalorder %s45, %s46
    %p57 = scmp.eq.s32.totalorder %s14, 0
    %p58 = por %p56, %p57
    %p59 = scmp.ne.s32.totalorder %s45, %s46
    %p60 = scmp.eq.s32.totalorder %s15, 1
    %p61 = por %p59, %p60
    %p63 = scmp.ne.s32.totalorder %s46, %s62
    %p64 = scmp.eq.s32.totalorder %s15, 0
    %p65 = por %p63, %p64
    %s66 = ssub.s32 %s16, %s35
    %p67 = scmp.eq.s32.totalorder %s66, 0
    %s69 = sadd.s32 %s68, 1
    %s70 = scalar_select %p67, %s68, %s69
    %p73 = pneg %p67
    %p74 = scmp.eq.s32.totalorder %s9, 1
    %p75 = por %p73, %p74
    %p76 = scmp.ne.s32.totalorder %s68, %s71
    %p77 = scmp.eq.s32.totalorder %s9, 0
    %p78 = por %p76, %p77
    %p79 = scmp.ne.s32.totalorder %s68, %s71
    %p80 = scmp.eq.s32.totalorder %s14, 1
    %p81 = por %p79, %p80
    %p82 = scmp.ne.s32.totalorder %s71, %s72
    %p83 = scmp.eq.s32.totalorder %s14, 0
    %p84 = por %p82, %p83
    %p85 = scmp.ne.s32.totalorder %s71, %s72
    %p86 = scmp.eq.s32.totalorder %s15, 1
    %p87 = por %p85, %p86
    %p89 = scmp.ne.s32.totalorder %s72, %s88
    %p90 = scmp.eq.s32.totalorder %s15, 0
    %p91 = por %p89, %p90
    %s92 = ssub.s32 %s16, %s35
    %p93 = scmp.eq.s32.totalorder %s92, 0
    %s95 = sadd.s32 %s94, 1
    %s96 = scalar_select %p93, %s94, %s95
    %p99 = pneg %p93
    %p100 = scmp.eq.s32.totalorder %s9, 1
    %p101 = por %p99, %p100
    %p102 = scmp.ne.s32.totalorder %s94, %s97
    %p103 = scmp.eq.s32.totalorder %s9, 0
    %p104 = por %p102, %p103
    %p105 = scmp.ne.s32.totalorder %s94, %s97
    %p106 = scmp.eq.s32.totalorder %s14, 1
    %p107 = por %p105, %p106
    %p108 = scmp.ne.s32.totalorder %s97, %s98
    %p109 = scmp.eq.s32.totalorder %s14, 0
    %p110 = por %p108, %p109
    %p111 = scmp.ne.s32.totalorder %s97, %s98
    %p112 = scmp.eq.s32.totalorder %s15, 1
    %p113 = por %p111, %p112
    %p115 = scmp.ne.s32.totalorder %s98, %s114
    %p116 = scmp.eq.s32.totalorder %s15, 0
    %p117 = por %p115, %p116
    %s118 = ssub.s32 %s17, %s31
    %s119 = ssub.s32 %s16, %s35
    %s120 = sor.u32 %s118, %s119
    %s121 = ssub.s32 %s18, %s27
    %s122 = sor.u32 %s120, %s121
    %p123 = scmp.eq.s32.totalorder %s122, 0
    %s125 = sadd.s32 %s124, 1
    %s126 = scalar_select %p123, %s124, %s125
    %p129 = pneg %p123
    %p130 = scmp.eq.s32.totalorder %s9, 1
    %p131 = por %p129, %p130
    %p132 = scmp.ne.s32.totalorder %s124, %s127
    %p133 = scmp.eq.s32.totalorder %s9, 0
    %p134 = por %p132, %p133
    %p135 = scmp.ne.s32.totalorder %s124, %s127
    %p136 = scmp.eq.s32.totalorder %s14, 1
    %p137 = por %p135, %p136
    %p138 = scmp.ne.s32.totalorder %s127, %s128
    %p139 = scmp.eq.s32.totalorder %s14, 0
    %p140 = por %p138, %p139
    %p141 = scmp.ne.s32.totalorder %s127, %s128
    %p142 = scmp.eq.s32.totalorder %s15, 1
    %p143 = por %p141, %p142
    %p145 = scmp.ne.s32.totalorder %s128, %s144
    %p146 = scmp.eq.s32.totalorder %s15, 0
    %p147 = por %p145, %p146
    %p148 = scmp.le.s32.totalorder 1, %s9
    %p149 = scmp.lt.s32.totalorder %s9, 3
    %p150 = pnand %p148, %p149
    %p151 = pneg %p150
    // Predicated region
    $region9: #{batchnorm2d_pallas.3} parent=5 // pred_check
      _
    $region10: #{batchnorm2d_pallas.3} parent=5 // pred_check_branch
      %153 = sbr.rel (%p150) target = $region12
    $region11: #{batchnorm2d_pallas.3} parent=5 // pred_region
      %s154 = ssub.s32 %s9, 1
      // Predicated region
      $region13: #{batchnorm2d_pallas.3} parent=11 // pred_check
        %p155 = pneg %p84
      $region14: #{batchnorm2d_pallas.3} parent=11 // pred_check_branch
        %157 = sbr.rel (%p155) target = $region16
      $region15: #{batchnorm2d_pallas.3} parent=11 // pred_region
        %p158 = scmp.lt.s32.totalorder %s19, 0
        %s159 = scalar_select %p158, %s19, 0
        %s160 = smul.addr %s159, 4
        %s161 = scalar_lea.vmem %s1, %s160
      $region16: #{batchnorm2d_pallas.3} parent=11 // pred_fallthru
        _
      // Predicated region
      $region17: #{batchnorm2d_pallas.3} parent=11 // pred_check
        %p162 = pneg %p110
      $region18: #{batchnorm2d_pallas.3} parent=11 // pred_check_branch
        %164 = sbr.rel (%p162) target = $region20
      $region19: #{batchnorm2d_pallas.3} parent=11 // pred_region
        %p165 = scmp.lt.s32.totalorder %s19, 0
        %s166 = scalar_select %p165, %s19, 0
        %s167 = smul.addr %s166, 4
        %s168 = scalar_lea.vmem %s2, %s167
      $region20: #{batchnorm2d_pallas.3} parent=11 // pred_fallthru
        _
    $region12: #{batchnorm2d_pallas.3} parent=5 // pred_fallthru
      _
    %p169 = scmp.lt.s32.totalorder %s9, 2
    // Predicated region
    $region21: #{batchnorm2d_pallas.3} parent=5 // pred_check
      %p170 = pneg %p169
    $region22: #{batchnorm2d_pallas.3} parent=5 // pred_check_branch
      %172 = sbr.rel (%p170) target = $region24
    $region23: #{batchnorm2d_pallas.3} parent=5 // pred_region
      // Predicated region
      $region25: #{batchnorm2d_pallas.3} parent=23 // pred_check
        %p173 = pneg %p52
      $region26: #{batchnorm2d_pallas.3} parent=23 // pred_check_branch
        %175 = sbr.rel (%p173) target = $region28
      $region27: #{batchnorm2d_pallas.3} parent=23 // pred_region
        %s176 = smul.u32 2, %s18
        %p177 = scmp.lt.s32.totalorder %s17, 1
        %s178 = scalar_select %p177, %s17, 1
        %p179 = scmp.lt.s32.totalorder %s16, 0
        %s180 = scalar_select %p179, %s16, 0
        %p181 = scmp.lt.s32.totalorder %s176, 1
        %s182 = scalar_select %p181, %s176, 1
        %s183 = smul.addr %s180, 2
        %s184 = sadd.s32 %s182, %s183
        %s185 = smul.addr %s178, 2
        %s186 = sadd.s32 %s184, %s185
        %s187 = smul.addr %s186, 4
        %s188 = scalar_lea.vmem %s0, %s187
        %s189 = smul.u32 2, %s18
      $region28: #{batchnorm2d_pallas.3} parent=23 // pred_fallthru
        _
    $region24: #{batchnorm2d_pallas.3} parent=5 // pred_fallthru
      _
    %p190 = scmp.le.s32.totalorder 1, %s9
    %p191 = scmp.lt.s32.totalorder %s9, 3
    %p192 = pnand %p190, %p191
    %p193 = pneg %p192
    // Predicated region
    $region29: #{batchnorm2d_pallas.3} parent=5 // pred_check
      _
    $region30: #{batchnorm2d_pallas.3} parent=5 // pred_check_branch
      %195 = sbr.rel (%p192) target = $region32
    $region31: #{batchnorm2d_pallas.3} parent=5 // pred_region
      %s196 = ssub.s32 %s9, 1
      %s197 = smul.u32 2, %s21
      %p198 = scmp.lt.s32.totalorder %s20, 1
      %s199 = scalar_select %p198, %s20, 1
      %p200 = scmp.lt.s32.totalorder %s19, 0
      %s201 = scalar_select %p200, %s19, 0
      %p202 = scmp.lt.s32.totalorder %s197, 1
      %s203 = scalar_select %p202, %s197, 1
      %s204 = smul.addr %s201, 2
      %s205 = sadd.s32 %s203, %s204
      %s206 = smul.addr %s199, 2
      %s207 = sadd.s32 %s205, %s206
      %s208 = smul.addr %s207, 4
      %s209 = scalar_lea.vmem %s0, %s208
      %p210 = pneg %p58
      %p211 = pneg %p55
      %p212 = scmp.lt.s32.totalorder %s19, 0
      %s213 = scalar_select %p212, %s19, 0
      %s214 = smul.addr %s213, 4
      %s215 = scalar_lea.vmem %s1, %s214
      %p216 = pneg %p84
      %p217 = pneg %p81
      %p218 = scmp.lt.s32.totalorder %s19, 0
      %s219 = scalar_select %p218, %s19, 0
      %s220 = smul.addr %s219, 4
      %s221 = scalar_lea.vmem %s2, %s220
      %p222 = pneg %p110
      %p223 = pneg %p107
      %p224 = pneg %p140
      %p225 = pneg %p137
      %s226 = smul.u32 2, %s21
      %p227 = scmp.lt.s32.totalorder %s20, 1
      %s228 = scalar_select %p227, %s20, 1
      %p229 = scmp.lt.s32.totalorder %s19, 0
      %s230 = scalar_select %p229, %s19, 0
      %p231 = scmp.lt.s32.totalorder %s226, 1
      %s232 = scalar_select %p231, %s226, 1
      %s233 = smul.addr %s230, 2
      %s234 = sadd.s32 %s232, %s233
      %s235 = smul.addr %s228, 2
      %s236 = sadd.s32 %s234, %s235
      %s237 = smul.addr %s236, 4
      %s238 = scalar_lea.vmem %s3, %s237
      %s239 = smul.u32 2, %s21
      %p240 = scmp.lt.s32.totalorder %s20, 1
      %s241 = scalar_select %p240, %s20, 1
      %p242 = scmp.lt.s32.totalorder %s19, 0
      %s243 = scalar_select %p242, %s19, 0
      %p244 = scmp.lt.s32.totalorder %s239, 1
      %s245 = scalar_select %p244, %s239, 1
      %s246 = smul.addr %s243, 2
      %s247 = sadd.s32 %s245, %s246
      %s248 = smul.addr %s241, 2
      %s249 = sadd.s32 %s247, %s248
      %s250 = smul.addr %s249, 4
      %s251 = scalar_lea.vmem %s0, %s250
      %s252 = smul.u32 2, %s21
      %p253 = scmp.lt.s32.totalorder %s19, 0
      %s254 = scalar_select %p253, %s19, 0
      %s255 = smul.addr %s254, 4
      %s256 = scalar_lea.vmem %s1, %s255
      %p257 = scmp.lt.s32.totalorder %s19, 0
      %s258 = scalar_select %p257, %s19, 0
      %s259 = smul.addr %s258, 4
      %s260 = scalar_lea.vmem %s2, %s259
      %s261 = smul.u32 2, %s21
      %p262 = scmp.lt.s32.totalorder %s20, 1
      %s263 = scalar_select %p262, %s20, 1
      %p264 = scmp.lt.s32.totalorder %s19, 0
      %s265 = scalar_select %p264, %s19, 0
      %p266 = scmp.lt.s32.totalorder %s261, 1
      %s267 = scalar_select %p266, %s261, 1
      %s268 = smul.addr %s265, 2
      %s269 = sadd.s32 %s267, %s268
      %s270 = smul.addr %s263, 2
      %s271 = sadd.s32 %s269, %s270
      %s272 = smul.addr %s271, 4
      %s273 = scalar_lea.vmem %s3, %s272
      %s274 = smul.u32 2, %s21
      %v275 = vld [vmem:[%s251] sm:$0xff]
      %v276 = vld [vmem:[%s256] sm:$0xf]
      %278 = vset.pattern.permute.xlu0 0
      %279 = vperm.xlu0 %278, %v276
      %v280 = vpop.permute.xlu0 %279
      %v282 = vunpack.c.l.s4 839922192
      %v283 = vunpack.c.0.s8 %v282
      %v284 = vlaneseq
      %v285 = vshrl.u32 %v284, 7
      %v286 = vsub.s32 %v283, %v285
      %v287 = vrot.slane %v280, %v286
      %v289 = vmul.f32 %v275, %v287
      %v290 = vld [vmem:[%s260] sm:$0xf]
      %292 = vset.pattern.permute.xlu0 0
      %293 = vperm.xlu0 %292, %v290
      %v294 = vpop.permute.xlu0 %293
      %v296 = vunpack.c.l.s4 839922192
      %v297 = vunpack.c.0.s8 %v296
      %v298 = vlaneseq
      %v299 = vshrl.u32 %v298, 7
      %v300 = vsub.s32 %v297, %v299
      %v301 = vrot.slane %v294, %v300
      %v303 = vadd.f32 %v289, %v301
      %304 = vst [vmem:[%s273] sm:$0xff] %v303
      %s305 = smul.u32 2, %s21
      %p306 = scmp.lt.s32.totalorder %s20, 1
      %s307 = scalar_select %p306, %s20, 1
      %p308 = scmp.lt.s32.totalorder %s19, 0
      %s309 = scalar_select %p308, %s19, 0
      %p310 = scmp.lt.s32.totalorder %s305, 1
      %s311 = scalar_select %p310, %s305, 1
      %s312 = smul.addr %s309, 2
      %s313 = sadd.s32 %s311, %s312
      %s314 = smul.addr %s307, 2
      %s315 = sadd.s32 %s313, %s314
      %s316 = smul.addr %s315, 4
      %s317 = scalar_lea.vmem %s3, %s316
      // Predicated region
      $region33: #{batchnorm2d_pallas.3} parent=31 // pred_check
        %p318 = pneg %p137
      $region34: #{batchnorm2d_pallas.3} parent=31 // pred_check_branch
        %320 = sbr.rel (%p318) target = $region36
      $region35: #{batchnorm2d_pallas.3} parent=31 // pred_region
        %s321 = smul.u32 2, %s21
      $region36: #{batchnorm2d_pallas.3} parent=31 // pred_fallthru
        _
    $region32: #{batchnorm2d_pallas.3} parent=5 // pred_fallthru
      _
    %p322 = scmp.le.s32.totalorder 2, %s9
    // Predicated region
    $region37: #{batchnorm2d_pallas.3} parent=5 // pred_check
      %p323 = pneg %p322
    $region38: #{batchnorm2d_pallas.3} parent=5 // pred_check_branch
      %325 = sbr.rel (%p323) target = $region40
    $region39: #{batchnorm2d_pallas.3} parent=5 // pred_region
      %s326 = ssub.s32 %s9, 2
      // Predicated region
      $region41: #{batchnorm2d_pallas.3} parent=39 // pred_check
        %p327 = pneg %p143
      $region42: #{batchnorm2d_pallas.3} parent=39 // pred_check_branch
        %329 = sbr.rel (%p327) target = $region44
      $region43: #{batchnorm2d_pallas.3} parent=39 // pred_region
        %s330 = smul.u32 2, %s24
        %p331 = scmp.lt.s32.totalorder %s23, 1
        %s332 = scalar_select %p331, %s23, 1
        %p333 = scmp.lt.s32.totalorder %s22, 0
        %s334 = scalar_select %p333, %s22, 0
        %p335 = scmp.lt.s32.totalorder %s330, 1
        %s336 = scalar_select %p335, %s330, 1
        %s337 = smul.addr %s334, 2
        %s338 = sadd.s32 %s336, %s337
        %s339 = smul.addr %s332, 2
        %s340 = sadd.s32 %s338, %s339
        %s341 = smul.addr %s340, 4
        %s342 = scalar_lea.vmem %s3, %s341
      $region44: #{batchnorm2d_pallas.3} parent=39 // pred_fallthru
        _
    $region40: #{batchnorm2d_pallas.3} parent=5 // pred_fallthru
      _
  $region6: #{batchnorm2d_pallas.3} parent=0 // loop_footer
    %s13 = sadd.s32 1, %s9
  $region7: #{batchnorm2d_pallas.3} parent=0 // loop_footer_branch
    %8 = sbr.rel target = $region3
  $region8: #{batchnorm2d_pallas.3} parent=0 // loop_exit
    _

</llo_original>
